<compile_context>
chip_gen: v7x
topology: tpu7x:2x2x1
jax: 0.10.0
libtpu: 0.0.40
codegen_flags: <defaults>
</compile_context>

<pallas_src>
import jax
import jax.numpy as jnp
from jax.experimental import pallas as pl
from jax.experimental.pallas import tpu as pltpu

_LANE = 128   # lane width: feature / class dims are padded to this
_EPS = 1e-5   # BatchNorm1d default eps


# ----------------------------------------------------------------------------
# Fused Pallas kernel: BOTH GCN layers for one row-tile of nodes, all in VMEM.
#   h   = relu( A_ii @ (X W1')_i + b1' )          (conv1 + folded BN + ReLU)
#   out = ( A_ii @ h ) @ W2 + b2                  (conv2)
# A_ii is the (tm, tm) diagonal block of A_hat for this tile (exact because
# the batched graphs are block-diagonal w.r.t. the tiling, verified on host).
# ----------------------------------------------------------------------------
def _gcn_fused_kernel(a_ref, xw1_ref, w2_ref, b1_ref, b2_ref, o_ref):
    a = a_ref[...]                                              # (tm, tm) bf16

    # ---- Layer 1: conv1 (+ BatchNorm folded into W1'/b1') + ReLU -----------
    h = jnp.dot(a, xw1_ref[...], preferred_element_type=jnp.float32)
    h = jnp.maximum(h + b1_ref[...], 0.0)                       # (tm, 128) f32

    # Dropout: eval/inference path -> identity.
    # TODO(synk): training-mode dropout would use pltpu.prng_random_bits here.

    # ---- Layer 2: conv2 (aggregate, then project; both dims 128-lane) ------
    ah = jnp.dot(a, h.astype(jnp.bfloat16), preferred_element_type=jnp.float32)
    out = jnp.dot(ah.astype(jnp.bfloat16), w2_ref[...],
                  preferred_element_type=jnp.float32) + b2_ref[...]
    o_ref[...] = out.astype(o_ref.dtype)


def _gcn_fused(a_p, xw1_p, w2_p, b1_p, b2_p, *, tm, out_dtype=jnp.float32):
    n_pad = a_p.shape[0]
    h_pad = xw1_p.shape[1]
    c_pad = w2_p.shape[1]
    grid = (n_pad // tm,)
    return pl.pallas_call(
        _gcn_fused_kernel,
        out_shape=jax.ShapeDtypeStruct((n_pad, c_pad), out_dtype),
        grid_spec=pltpu.PrefetchScalarGridSpec(
            num_scalar_prefetch=0,
            grid=grid,
            in_specs=[
                pl.BlockSpec((tm, tm), lambda i: (i, i)),        # A_hat diag block
                pl.BlockSpec((tm, h_pad), lambda i: (i, 0)),     # (X @ W1') row tile
                pl.BlockSpec((h_pad, c_pad), lambda i: (0, 0)),  # W2 (grid-invariant)
                pl.BlockSpec((1, h_pad), lambda i: (0, 0)),      # b1' (BN folded)
                pl.BlockSpec((1, c_pad), lambda i: (0, 0)),      # b2
            ],
            out_specs=pl.BlockSpec((tm, c_pad), lambda i: (i, 0)),
        ),
        compiler_params=pltpu.CompilerParams(
            # grid is 1 tile on single-TC chips, 2 parallel tiles on v7x.
            dimension_semantics=("parallel",),
            # <1 MiB used today; 32 MiB is safe on v5e/v6e (128 MiB) and v7x
            # (64 MiB).  Re-derive before scaling N_pad / tm.
            vmem_limit_bytes=32 * 1024 * 1024,
        ),
    )(a_p, xw1_p, w2_p, b1_p, b2_p)


# ----------------------------------------------------------------------------
# Host-side prep: fold BN + conv1 bias into W1'/b1', precompute X @ W1',
# pad to lane-dense / tile-aligned shapes, cast MXU operands to bf16, pick the
# per-generation tile size and verify the block-diagonal tiling assumption.
# ----------------------------------------------------------------------------
def _pad2(x, shape, dtype):
    pad = [(0, s - d) for s, d in zip(shape, x.shape)]
    return jnp.pad(x, pad).astype(dtype)


def _pick_tm(n_pad):
    """v7x has 2 TensorCores -> 2 parallel tiles; single-TC chips -> 1 tile."""
    try:
        kind = jax.devices()[0].device_kind.lower()
    except Exception:
        kind = ""
    if "v7" in kind and (n_pad // 2) % _LANE == 0:
        return n_pad // 2
    return n_pad


def _is_block_diagonal(a_pad_f32, tm):
    n_pad = a_pad_f32.shape[0]
    nt = n_pad // tm
    if nt <= 1:
        return True
    blocks = a_pad_f32.reshape(nt, tm, nt, tm)
    off = jnp.where(jnp.eye(nt, dtype=bool)[:, None, :, None], 0.0, blocks)
    return bool(jnp.all(off == 0.0))


def prepare_gcn(a_hat, x, w1, b1, gamma, beta, run_mean, run_var, w2, b2,
                *, tm=None):
    n, _ = x.shape
    h = w1.shape[1]
    c = w2.shape[1]
    h_pad = pl.cdiv(h, _LANE) * _LANE
    c_pad = pl.cdiv(c, _LANE) * _LANE
    n_pad = pl.cdiv(n, _LANE) * _LANE

    # Fold eval-mode BatchNorm1d (and conv1 bias) into W1/b1 (exact).
    s = gamma * jax.lax.rsqrt(run_var + _EPS)          # (1, H)
    w1f = w1 * s                                       # (F, H)
    b1f = (b1 - run_mean) * s + beta                   # (1, H)

    # Precompute the tiny projection X @ W1' on the host so the kernel's
    # layer-1 body is a single lane-dense MXU matmul.
    xw1 = jnp.dot(x, w1f, precision=jax.lax.Precision.HIGHEST)   # (N, H) f32

    a_pad_f32 = _pad2(a_hat, (n_pad, n_pad), jnp.float32)

    if tm is None:
        tm = _pick_tm(n_pad)
    # (i, i) diagonal-block indexing of A_hat (and per-tile layer fusion) is
    # exact only if every graph's nodes fall inside one row tile.  Verify; if
    # not, fall back to a single tile covering all nodes (always exact).
    if tm < n_pad and not _is_block_diagonal(a_pad_f32, tm):
        tm = n_pad

    return dict(
        a=a_pad_f32.astype(jnp.bfloat16),
        xw1=_pad2(xw1, (n_pad, h_pad), jnp.bfloat16),
        w2=_pad2(w2, (h_pad, c_pad), jnp.bfloat16),
        b1=_pad2(b1f, (1, h_pad), jnp.float32),
        b2=_pad2(b2, (1, c_pad), jnp.float32),
        n=n, c=c, tm=tm,
    )


def gcn_forward(p):
    out = _gcn_fused(p["a"], p["xw1"], p["w2"], p["b1"], p["b2"], tm=p["tm"])
    return out[:p["n"], :p["c"]]


# ----------------------------------------------------------------------------
# References.
# ----------------------------------------------------------------------------
def gcn_matched_ref(p):
    """Mirrors the kernel's bf16 casts exactly (tight comparison)."""
    hp = jax.lax.Precision.HIGHEST
    a = p["a"].astype(jnp.float32)
    h = jnp.dot(a, p["xw1"].astype(jnp.float32), precision=hp)
    h = jnp.maximum(h + p["b1"], 0.0)
    ah = jnp.dot(a, h.astype(jnp.bfloat16).astype(jnp.float32), precision=hp)
    out = jnp.dot(ah.astype(jnp.bfloat16).astype(jnp.float32),
                  p["w2"].astype(jnp.float32), precision=hp) + p["b2"]
    return out[:p["n"], :p["c"]]


def gcn_ref_f32(a_hat, x, w1, b1, gamma, beta, run_mean, run_var, w2, b2):
    """Original full-precision module semantics (BN unfolded)."""
    hp = jax.lax.Precision.HIGHEST
    h = jnp.dot(a_hat, jnp.dot(x, w1, precision=hp), precision=hp) + b1
    h = (h - run_mean) * jax.lax.rsqrt(run_var + _EPS) * gamma + beta
    h = jnp.maximum(h, 0.0)
    return jnp.dot(a_hat, jnp.dot(h, w2, precision=hp), precision=hp) + b2


def build_norm_adj(edge_index, num_nodes):
    src, dst = edge_index
    A = jnp.zeros((num_nodes, num_nodes), jnp.float32)
    A = A.at[dst, src].add(1.0)                               # message src->dst
    A = A + jnp.eye(num_nodes, dtype=jnp.float32)             # self loops
    deg = A.sum(axis=1)
    d_inv_sqrt = jnp.where(deg > 0, 1.0 / jnp.sqrt(deg), 0.0)
    return d_inv_sqrt[:, None] * A * d_inv_sqrt[None, :]


if __name__ == "__main__":
    key = jax.random.PRNGKey(0)

    # Batch 16 small graphs block-diagonally into one 256-node launch
    # (amortizes launch/DMA overhead; disconnected graphs keep A_hat exact and
    # make the (i, i) diagonal-block tiling legal).
    num_graphs = 16
    nodes_per_graph = 16
    num_nodes = num_graphs * nodes_per_graph            # 256
    num_node_features = 8
    hidden = 32
    num_classes = 4

    k = iter(jax.random.split(key, 10))

    x = jax.random.normal(next(k), (num_nodes, num_node_features), jnp.float32)

    # Deterministic per-graph topology: bidirectional ring + a few chords,
    # offset per graph -> block-diagonal batched adjacency.
    base = jnp.arange(nodes_per_graph)
    ring_src = jnp.concatenate([base, (base + 1) % nodes_per_graph,
                                jnp.array([0, 4, 8, 12])])
    ring_dst = jnp.concatenate([(base + 1) % nodes_per_graph, base,
                                jnp.array([8, 12, 0, 4])])
    offsets = (jnp.arange(num_graphs) * nodes_per_graph)[:, None]
    src = (ring_src[None, :] + offsets).reshape(-1)
    dst = (ring_dst[None, :] + offsets).reshape(-1)
    edge_index = jnp.stack([src, dst]).astype(jnp.int32)

    a_hat = build_norm_adj(edge_index, num_nodes)

    # Parameters (deterministic, Glorot-ish scale)
    w1 = jax.random.normal(next(k), (num_node_features, hidden), jnp.float32) * 0.2
    b1 = jax.random.normal(next(k), (1, hidden), jnp.float32) * 0.05
    w2 = jax.random.normal(next(k), (hidden, num_classes), jnp.float32) * 0.2
    b2 = jax.random.normal(next(k), (1, num_classes), jnp.float32) * 0.05

    # BatchNorm1d(32) params & running stats (eval mode)
    gamma = 1.0 + 0.1 * jax.random.normal(next(k), (1, hidden), jnp.float32)
    beta = 0.1 * jax.random.normal(next(k), (1, hidden), jnp.float32)
    run_mean = 0.1 * jax.random.normal(next(k), (1, hidden), jnp.float32)
    run_var = jnp.abs(1.0 + 0.1 * jax.random.normal(next(k), (1, hidden),
                                                    jnp.float32))

    prepared = prepare_gcn(a_hat, x, w1, b1, gamma, beta, run_mean, run_var,
                           w2, b2)

    out = gcn_forward(prepared)
    out = jax.block_until_ready(out)
    assert out.shape == (num_nodes, num_classes)

    # Tight check against a reference that mirrors the kernel's bf16 casts.
    ref_matched = gcn_matched_ref(prepared)
    assert jnp.allclose(out, ref_matched, atol=5e-3, rtol=5e-3)

    # Loose check against the original f32 module semantics (BN unfolded);
    # difference is purely the bf16 cast of the MXU operands.
    ref_f32 = gcn_ref_f32(a_hat, x, w1, b1, gamma, beta, run_mean, run_var,
                          w2, b2)
    assert jnp.allclose(out, ref_f32, atol=0.15, rtol=0.1)

    print("KERNEL_OK")
</pallas_src>

<mosaic_0001>
module attributes {stable_mosaic.version = 11 : i64} {
  func.func @_gcn_fused_kernel(%arg0: i32, %arg1: memref<256x256xbf16, #tpu.memory_space<vmem>>, %arg2: memref<256x128xbf16, #tpu.memory_space<vmem>>, %arg3: memref<128x128xbf16, #tpu.memory_space<vmem>>, %arg4: memref<1x128xf32, #tpu.memory_space<vmem>>, %arg5: memref<1x128xf32, #tpu.memory_space<vmem>>, %arg6: memref<256x128xf32, #tpu.memory_space<vmem>>) attributes {dimension_semantics = [#tpu.dimension_semantics<parallel>], iteration_bounds = array<i64: 1>, scalar_prefetch = 0 : i64, scratch_operands = 0 : i64, tpu.core_type = #tpu.core_type<tc>, window_params = [{transform_indices = @transform_0, window_bounds = array<i64: 256, 256>}, {transform_indices = @transform_1, window_bounds = array<i64: 256, 128>}, {pipeline_mode = #tpu.pipeline_mode<synchronous>, transform_indices = @transform_2, window_bounds = array<i64: 128, 128>}, {pipeline_mode = #tpu.pipeline_mode<synchronous>, transform_indices = @transform_3, window_bounds = array<i64: 1, 128>}, {pipeline_mode = #tpu.pipeline_mode<synchronous>, transform_indices = @transform_4, window_bounds = array<i64: 1, 128>}, {transform_indices = @transform_5, window_bounds = array<i64: 256, 128>}]} {
    %c0 = arith.constant 0 : index
    %c0_0 = arith.constant 0 : index
    %0 = vector.load %arg1[%c0, %c0_0] : memref<256x256xbf16, #tpu.memory_space<vmem>>, vector<256x256xbf16>
    %c0_1 = arith.constant 0 : index
    %c0_2 = arith.constant 0 : index
    %1 = vector.load %arg2[%c0_1, %c0_2] : memref<256x128xbf16, #tpu.memory_space<vmem>>, vector<256x128xbf16>
    %cst = arith.constant dense<0.000000e+00> : vector<256x128xf32>
    %2 = tpu.matmul %0, %1, %cst {dimension_numbers = #tpu.dot_dimension_numbers<[1], [0], [0], [1], [0, 0, 1, 1], [], []>} : vector<256x256xbf16>, vector<256x128xbf16>, vector<256x128xf32> -> vector<256x128xf32>
    %c0_3 = arith.constant 0 : index
    %c0_4 = arith.constant 0 : index
    %3 = vector.load %arg4[%c0_3, %c0_4] : memref<1x128xf32, #tpu.memory_space<vmem>>, vector<1x128xf32>
    %4 = vector.broadcast %3 : vector<1x128xf32> to vector<256x128xf32>
    %5 = arith.addf %2, %4 : vector<256x128xf32>
    %cst_5 = arith.constant 0.000000e+00 : f32
    %6 = vector.broadcast %cst_5 : f32 to vector<256x128xf32>
    %7 = arith.maximumf %5, %6 : vector<256x128xf32>
    %8 = arith.truncf %7 : vector<256x128xf32> to vector<256x128xbf16>
    %cst_6 = arith.constant dense<0.000000e+00> : vector<256x128xf32>
    %9 = tpu.matmul %0, %8, %cst_6 {dimension_numbers = #tpu.dot_dimension_numbers<[1], [0], [0], [1], [0, 0, 1, 1], [], []>} : vector<256x256xbf16>, vector<256x128xbf16>, vector<256x128xf32> -> vector<256x128xf32>
    %10 = arith.truncf %9 : vector<256x128xf32> to vector<256x128xbf16>
    %c0_7 = arith.constant 0 : index
    %c0_8 = arith.constant 0 : index
    %11 = vector.load %arg3[%c0_7, %c0_8] : memref<128x128xbf16, #tpu.memory_space<vmem>>, vector<128x128xbf16>
    %cst_9 = arith.constant dense<0.000000e+00> : vector<256x128xf32>
    %12 = tpu.matmul %10, %11, %cst_9 {dimension_numbers = #tpu.dot_dimension_numbers<[1], [0], [0], [1], [0, 0, 1, 1], [], []>} : vector<256x128xbf16>, vector<128x128xbf16>, vector<256x128xf32> -> vector<256x128xf32>
    %c0_10 = arith.constant 0 : index
    %c0_11 = arith.constant 0 : index
    %13 = vector.load %arg5[%c0_10, %c0_11] : memref<1x128xf32, #tpu.memory_space<vmem>>, vector<1x128xf32>
    %14 = vector.broadcast %13 : vector<1x128xf32> to vector<256x128xf32>
    %15 = arith.addf %12, %14 : vector<256x128xf32>
    %c0_12 = arith.constant 0 : index
    %c0_13 = arith.constant 0 : index
    %16 = vector.load %arg6[%c0_12, %c0_13] : memref<256x128xf32, #tpu.memory_space<vmem>>, vector<256x128xf32>
    tpu.vector_store %arg6[%c0_12, %c0_13], %15 {strides = array<i32>} : memref<256x128xf32, #tpu.memory_space<vmem>>, vector<256x128xf32>,
    return
  }
  func.func @transform_0(%arg0: i32) -> (i32, i32) {
    %c0_i32 = arith.constant 0 : i32
    return %arg0, %arg0 : i32, i32
  }
  func.func @transform_1(%arg0: i32) -> (i32, i32) {
    %c0_i32 = arith.constant 0 : i32
    %c0_i32_0 = arith.constant 0 : i32
    return %arg0, %c0_i32 : i32, i32
  }
  func.func @transform_2(%arg0: i32) -> (i32, i32) {
    %c0_i32 = arith.constant 0 : i32
    %c0_i32_0 = arith.constant 0 : i32
    %c0_i32_1 = arith.constant 0 : i32
    return %c0_i32, %c0_i32_0 : i32, i32
  }
  func.func @transform_3(%arg0: i32) -> (i32, i32) {
    %c0_i32 = arith.constant 0 : i32
    %c0_i32_0 = arith.constant 0 : i32
    %c0_i32_1 = arith.constant 0 : i32
    return %c0_i32, %c0_i32_0 : i32, i32
  }
  func.func @transform_4(%arg0: i32) -> (i32, i32) {
    %c0_i32 = arith.constant 0 : i32
    %c0_i32_0 = arith.constant 0 : i32
    %c0_i32_1 = arith.constant 0 : i32
    return %c0_i32, %c0_i32_0 : i32, i32
  }
  func.func @transform_5(%arg0: i32) -> (i32, i32) {
    %c0_i32 = arith.constant 0 : i32
    %c0_i32_0 = arith.constant 0 : i32
    return %arg0, %c0_i32 : i32, i32
  }
}

</mosaic_0001>

<llo_original>
// kernel: tpu_custom_call.1
$region0: #{tpu_custom_call.1}
  #allocation0 [shape = 'u32[]', space=smem, size = 0x4, offset = 0x4, fixed_abs, tag = 'smem constant byte address 0x4 - core index']
  #allocation1 [shape = 'u32[144,128]{1,0:T(1,128)}', space=vmem, size = 0x12000, scoped, tag = 'internal scratch']
  %s0 = inlined_call_operand.hbm [shape: bf16[256,256], index: 0, kind: input, shape index: {}]
  %s1 = inlined_call_operand.hbm [shape: bf16[256,128], index: 1, kind: input, shape index: {}]
  %s2 = inlined_call_operand.hbm [shape: bf16[128,128], index: 2, kind: input, shape index: {}]
  %s3 = inlined_call_operand.vmem [shape: f32[1,128], index: 3, kind: input, shape index: {}]
  %s4 = inlined_call_operand.vmem [shape: f32[1,128], index: 4, kind: input, shape index: {}]
  %s5 = inlined_call_operand.hbm [shape: f32[256,128], index: 5, kind: output, shape index: {}]
  %s6 = sld [smem:[#allocation0]]
  $region42: #{tpu_custom_call.1} parent=0
    _
  %s8 = ssub.s32 1, %s6
  %s9 = scalar_select 0, %s8, %s6
  $region1: #{tpu_custom_call.1} parent=0
    #allocation2 [shape = 'u8[131072]{0}', space=vmem, size = 0x20000, scoped, tag = 'input window, operand 0, single buffered']
    #allocation3 [shape = 's32[1]{0}', space=sflag, size = 0x4, scoped, tag = 'scoped memory for tpu_custom_call.1']
    #allocation4 [shape = 's32[1]{0}', space=sflag, size = 0x4, scoped, tag = 'scoped memory for tpu_custom_call.1']
    #allocation5 [shape = 'u8[65536]{0}', space=vmem, size = 0x10000, scoped, tag = 'input window, operand 1, single buffered']
    #allocation6 [shape = 's32[1]{0}', space=sflag, size = 0x4, scoped, tag = 'scoped memory for tpu_custom_call.1']
    #allocation7 [shape = 'u8[32768]{0}', space=vmem, size = 0x8000, scoped, tag = 'input window, operand 2, single buffered']
    #allocation8 [shape = 'u8[131072]{0}', space=vmem, size = 0x20000, scoped, tag = 'output window, operand 0, single buffered']
    %10 = vsyncpa [#allocation3], 0
    %11 = vsyncpa [#allocation6], 0
    %12 = vsyncpa [#allocation4], 0
    // Predicated region
    $region2: #{tpu_custom_call.1} parent=1 // pred_check
      _
    $region3: #{tpu_custom_call.1} parent=1 // pred_check_branch
      %14 = sbr.rel (0) target = $region5
    $region4: #{tpu_custom_call.1} parent=1 // pred_region
      %s16 = ssub.s32 4096, 4096
      %17 = vsyncadd [#allocation3], %s16
      %s18 = sshll.u32 [#allocation2], 4
      %s19 = int_to_ptr.vmem [resolvable:$true] %s18
      %24 = dma.hbm_to_vmem [thread:$0]  %s0, 4096, %s19, [#allocation3], 128, 128, 8
    $region5: #{tpu_custom_call.1} parent=1 // pred_fallthru
      _
    // Predicated region
    $region6: #{tpu_custom_call.1} parent=1 // pred_check
      _
    $region7: #{tpu_custom_call.1} parent=1 // pred_check_branch
      %26 = sbr.rel (0) target = $region9
    $region8: #{tpu_custom_call.1} parent=1 // pred_region
      %s28 = ssub.s32 2048, 2048
      %29 = vsyncadd [#allocation6], %s28
      %s30 = sshll.u32 [#allocation5], 4
      %s31 = int_to_ptr.vmem [resolvable:$true] %s30
      %36 = dma.hbm_to_vmem [thread:$0]  %s1, 2048, %s31, [#allocation6], 64, 64, 4
    $region9: #{tpu_custom_call.1} parent=1 // pred_fallthru
      _
    // Predicated region
    $region10: #{tpu_custom_call.1} parent=1 // pred_check
      _
    $region11: #{tpu_custom_call.1} parent=1 // pred_check_branch
      %38 = sbr.rel (0) target = $region13
    $region12: #{tpu_custom_call.1} parent=1 // pred_region
      %s40 = ssub.s32 1024, 1024
      %41 = vsyncadd [#allocation6], %s40
      %s42 = sshll.u32 [#allocation7], 4
      %s43 = int_to_ptr.vmem [resolvable:$true] %s42
      %48 = dma.hbm_to_vmem [thread:$0]  %s2, 1024, %s43, [#allocation6], 64, 64, 4
    $region13: #{tpu_custom_call.1} parent=1 // pred_fallthru
      _
    // Predicated region
    $region14: #{tpu_custom_call.1} parent=1 // pred_check
      _
    $region15: #{tpu_custom_call.1} parent=1 // pred_check_branch
      %50 = sbr.rel (0) target = $region17
    $region16: #{tpu_custom_call.1} parent=1 // pred_region
      _
    $region17: #{tpu_custom_call.1} parent=1 // pred_fallthru
      _
    // Predicated region
    $region18: #{tpu_custom_call.1} parent=1 // pred_check
      _
    $region19: #{tpu_custom_call.1} parent=1 // pred_check_branch
      %52 = sbr.rel (0) target = $region21
    $region20: #{tpu_custom_call.1} parent=1 // pred_region
      _
    $region21: #{tpu_custom_call.1} parent=1 // pred_fallthru
      _
    // Predicated region
    $region22: #{tpu_custom_call.1} parent=1 // pred_check
      _
    $region23: #{tpu_custom_call.1} parent=1 // pred_check_branch
      %54 = sbr.rel (0) target = $region25
    $region24: #{tpu_custom_call.1} parent=1 // pred_region
      %55 = dma.done [#allocation3], 4096
    $region25: #{tpu_custom_call.1} parent=1 // pred_fallthru
      _
    // Predicated region
    $region26: #{tpu_custom_call.1} parent=1 // pred_check
      _
    $region27: #{tpu_custom_call.1} parent=1 // pred_check_branch
      %57 = sbr.rel (0) target = $region29
    $region28: #{tpu_custom_call.1} parent=1 // pred_region
      %58 = dma.done [#allocation6], 2048
    $region29: #{tpu_custom_call.1} parent=1 // pred_fallthru
      _
    // Predicated region
    $region30: #{tpu_custom_call.1} parent=1 // pred_check
      _
    $region31: #{tpu_custom_call.1} parent=1 // pred_check_branch
      %60 = sbr.rel (0) target = $region33
    $region32: #{tpu_custom_call.1} parent=1 // pred_region
      %61 = dma.done [#allocation6], 1024
    $region33: #{tpu_custom_call.1} parent=1 // pred_fallthru
      _
    %v63 = vld [vmem:[#allocation2] sm:$0xff]
    %v64 = vld [vmem:[#allocation2 + $0x8] sm:$0xff]
    %v65 = vld [vmem:[#allocation2 + $0x10] sm:$0xff]
    %v66 = vld [vmem:[#allocation2 + $0x18] sm:$0xff]
    %v67 = vld [vmem:[#allocation2 + $0x20] sm:$0xff]
    %v68 = vld [vmem:[#allocation2 + $0x28] sm:$0xff]
    %v69 = vld [vmem:[#allocation2 + $0x30] sm:$0xff]
    %v70 = vld [vmem:[#allocation2 + $0x38] sm:$0xff]
    %v71 = vld [vmem:[#allocation2 + $0x40] sm:$0xff]
    %v72 = vld [vmem:[#allocation2 + $0x48] sm:$0xff]
    %v73 = vld [vmem:[#allocation2 + $0x50] sm:$0xff]
    %v74 = vld [vmem:[#allocation2 + $0x58] sm:$0xff]
    %v75 = vld [vmem:[#allocation2 + $0x60] sm:$0xff]
    %v76 = vld [vmem:[#allocation2 + $0x68] sm:$0xff]
    %v77 = vld [vmem:[#allocation2 + $0x70] sm:$0xff]
    %v78 = vld [vmem:[#allocation2 + $0x78] sm:$0xff]
    %v79 = vld [vmem:[#allocation2 + $0x80] sm:$0xff]
    %v80 = vld [vmem:[#allocation2 + $0x88] sm:$0xff]
    %v81 = vld [vmem:[#allocation2 + $0x90] sm:$0xff]
    %v82 = vld [vmem:[#allocation2 + $0x98] sm:$0xff]
    %v83 = vld [vmem:[#allocation2 + $0xa0] sm:$0xff]
    %v84 = vld [vmem:[#allocation2 + $0xa8] sm:$0xff]
    %v85 = vld [vmem:[#allocation2 + $0xb0] sm:$0xff]
    %v86 = vld [vmem:[#allocation2 + $0xb8] sm:$0xff]
    %v87 = vld [vmem:[#allocation2 + $0xc0] sm:$0xff]
    %v88 = vld [vmem:[#allocation2 + $0xc8] sm:$0xff]
    %v89 = vld [vmem:[#allocation2 + $0xd0] sm:$0xff]
    %v90 = vld [vmem:[#allocation2 + $0xd8] sm:$0xff]
    %v91 = vld [vmem:[#allocation2 + $0xe0] sm:$0xff]
    %v92 = vld [vmem:[#allocation2 + $0xe8] sm:$0xff]
    %v93 = vld [vmem:[#allocation2 + $0xf0] sm:$0xff]
    %v94 = vld [vmem:[#allocation2 + $0xf8] sm:$0xff]
    %v95 = vld [vmem:[#allocation5] sm:$0xf]
    %v96 = vld [vmem:[#allocation5 + $0x4] sm:$0xf]
    %v97 = vld [vmem:[#allocation5 + $0x8] sm:$0xf]
    %v98 = vld [vmem:[#allocation5 + $0xc] sm:$0xf]
    %v99 = vld [vmem:[#allocation5 + $0x10] sm:$0xf]
    %v100 = vld [vmem:[#allocation5 + $0x14] sm:$0xf]
    %v101 = vld [vmem:[#allocation5 + $0x18] sm:$0xf]
    %v102 = vld [vmem:[#allocation5 + $0x1c] sm:$0xf]
    %v103 = vld [vmem:[#allocation5 + $0x20] sm:$0xf]
    %v104 = vld [vmem:[#allocation5 + $0x24] sm:$0xf]
    %v105 = vld [vmem:[#allocation5 + $0x28] sm:$0xf]
    %v106 = vld [vmem:[#allocation5 + $0x2c] sm:$0xf]
    %v107 = vld [vmem:[#allocation5 + $0x30] sm:$0xf]
    %v108 = vld [vmem:[#allocation5 + $0x34] sm:$0xf]
    %v109 = vld [vmem:[#allocation5 + $0x38] sm:$0xf]
    %v110 = vld [vmem:[#allocation5 + $0x3c] sm:$0xf]
    %v111 = vld [vmem:[#allocation5 + $0x40] sm:$0xf]
    %v112 = vld [vmem:[#allocation5 + $0x44] sm:$0xf]
    %v113 = vld [vmem:[#allocation5 + $0x48] sm:$0xf]
    %v114 = vld [vmem:[#allocation5 + $0x4c] sm:$0xf]
    %v115 = vld [vmem:[#allocation5 + $0x50] sm:$0xf]
    %v116 = vld [vmem:[#allocation5 + $0x54] sm:$0xf]
    %v117 = vld [vmem:[#allocation5 + $0x58] sm:$0xf]
    %v118 = vld [vmem:[#allocation5 + $0x5c] sm:$0xf]
    %v119 = vld [vmem:[#allocation5 + $0x60] sm:$0xf]
    %v120 = vld [vmem:[#allocation5 + $0x64] sm:$0xf]
    %v121 = vld [vmem:[#allocation5 + $0x68] sm:$0xf]
    %v122 = vld [vmem:[#allocation5 + $0x6c] sm:$0xf]
    %v123 = vld [vmem:[#allocation5 + $0x70] sm:$0xf]
    %v124 = vld [vmem:[#allocation5 + $0x74] sm:$0xf]
    %v125 = vld [vmem:[#allocation5 + $0x78] sm:$0xf]
    %v126 = vld [vmem:[#allocation5 + $0x7c] sm:$0xf]
    %v127 = vld [vmem:[%s3] sm:$0x1]
    %v129 = vlaneseq
    %v130 = vshrl.u32 %v129, 7
    %v131 = vsub.s32 0, %v130
    %v132 = vrot.slane %v127, %v131
    %v166 = vunpack.c.l.b16 %v63
    %v167 = vunpack.c.h.b16 %v63
    %v168 = vunpack.c.l.b16 %v64
    %v169 = vunpack.c.h.b16 %v64
    %v170 = vunpack.c.l.b16 %v65
    %v171 = vunpack.c.h.b16 %v65
    %v172 = vunpack.c.l.b16 %v66
    %v173 = vunpack.c.h.b16 %v66
    %v174 = vunpack.c.l.b16 %v67
    %v175 = vunpack.c.h.b16 %v67
    %v176 = vunpack.c.l.b16 %v68
    %v177 = vunpack.c.h.b16 %v68
    %v178 = vunpack.c.l.b16 %v69
    %v179 = vunpack.c.h.b16 %v69
    %v180 = vunpack.c.l.b16 %v70
    %v181 = vunpack.c.h.b16 %v70
    %v182 = vunpack.c.l.b16 %v71
    %v183 = vunpack.c.h.b16 %v71
    %v184 = vunpack.c.l.b16 %v72
    %v185 = vunpack.c.h.b16 %v72
    %v186 = vunpack.c.l.b16 %v73
    %v187 = vunpack.c.h.b16 %v73
    %v188 = vunpack.c.l.b16 %v74
    %v189 = vunpack.c.h.b16 %v74
    %v190 = vunpack.c.l.b16 %v75
    %v191 = vunpack.c.h.b16 %v75
    %v192 = vunpack.c.l.b16 %v76
    %v193 = vunpack.c.h.b16 %v76
    %v194 = vunpack.c.l.b16 %v77
    %v195 = vunpack.c.h.b16 %v77
    %v196 = vunpack.c.l.b16 %v78
    %v197 = vunpack.c.h.b16 %v78
    %v198 = vunpack.c.l.b16 %v79
    %v199 = vunpack.c.h.b16 %v79
    %v200 = vunpack.c.l.b16 %v80
    %v201 = vunpack.c.h.b16 %v80
    %v202 = vunpack.c.l.b16 %v81
    %v203 = vunpack.c.h.b16 %v81
    %v204 = vunpack.c.l.b16 %v82
    %v205 = vunpack.c.h.b16 %v82
    %v206 = vunpack.c.l.b16 %v83
    %v207 = vunpack.c.h.b16 %v83
    %v208 = vunpack.c.l.b16 %v84
    %v209 = vunpack.c.h.b16 %v84
    %v210 = vunpack.c.l.b16 %v85
    %v211 = vunpack.c.h.b16 %v85
    %v212 = vunpack.c.l.b16 %v86
    %v213 = vunpack.c.h.b16 %v86
    %v214 = vunpack.c.l.b16 %v87
    %v215 = vunpack.c.h.b16 %v87
    %v216 = vunpack.c.l.b16 %v88
    %v217 = vunpack.c.h.b16 %v88
    %v218 = vunpack.c.l.b16 %v89
    %v219 = vunpack.c.h.b16 %v89
    %v220 = vunpack.c.l.b16 %v90
    %v221 = vunpack.c.h.b16 %v90
    %v222 = vunpack.c.l.b16 %v91
    %v223 = vunpack.c.h.b16 %v91
    %v224 = vunpack.c.l.b16 %v92
    %v225 = vunpack.c.h.b16 %v92
    %v226 = vunpack.c.l.b16 %v93
    %v227 = vunpack.c.h.b16 %v93
    %v228 = vunpack.c.l.b16 %v94
    %v229 = vunpack.c.h.b16 %v94
    %v230 = vpack.c.b16 %v168, %v166
    %v231 = vpack.c.b16 %v169, %v167
    %v232 = vpack.c.b16 %v172, %v170
    %v233 = vpack.c.b16 %v173, %v171
    %v234 = vpack.c.b16 %v176, %v174
    %v235 = vpack.c.b16 %v177, %v175
    %v236 = vpack.c.b16 %v180, %v178
    %v237 = vpack.c.b16 %v181, %v179
    %v238 = vpack.c.b16 %v184, %v182
    %v239 = vpack.c.b16 %v185, %v183
    %v240 = vpack.c.b16 %v188, %v186
    %v241 = vpack.c.b16 %v189, %v187
    %v242 = vpack.c.b16 %v192, %v190
    %v243 = vpack.c.b16 %v193, %v191
    %v244 = vpack.c.b16 %v196, %v194
    %v245 = vpack.c.b16 %v197, %v195
    %v246 = vpack.c.b16 %v200, %v198
    %v247 = vpack.c.b16 %v201, %v199
    %v248 = vpack.c.b16 %v204, %v202
    %v249 = vpack.c.b16 %v205, %v203
    %v250 = vpack.c.b16 %v208, %v206
    %v251 = vpack.c.b16 %v209, %v207
    %v252 = vpack.c.b16 %v212, %v210
    %v253 = vpack.c.b16 %v213, %v211
    %v254 = vpack.c.b16 %v216, %v214
    %v255 = vpack.c.b16 %v217, %v215
    %v256 = vpack.c.b16 %v220, %v218
    %v257 = vpack.c.b16 %v221, %v219
    %v258 = vpack.c.b16 %v224, %v222
    %v259 = vpack.c.b16 %v225, %v223
    %v260 = vpack.c.b16 %v228, %v226
    %v261 = vpack.c.b16 %v229, %v227
    %v326 = vunpack.c.l.b16 %v95
    %v327 = vunpack.c.l.b16 %v96
    %v328 = vunpack.c.l.b16 %v97
    %v329 = vunpack.c.l.b16 %v98
    %v330 = vunpack.c.l.b16 %v99
    %v331 = vunpack.c.l.b16 %v100
    %v332 = vunpack.c.l.b16 %v101
    %v333 = vunpack.c.l.b16 %v102
    %v334 = vunpack.c.l.b16 %v103
    %v335 = vunpack.c.l.b16 %v104
    %v336 = vunpack.c.l.b16 %v105
    %v337 = vunpack.c.l.b16 %v106
    %v338 = vunpack.c.l.b16 %v107
    %v339 = vunpack.c.l.b16 %v108
    %v340 = vunpack.c.l.b16 %v109
    %v341 = vunpack.c.l.b16 %v110
    %v342 = vunpack.c.l.b16 %v111
    %v343 = vunpack.c.l.b16 %v112
    %v344 = vunpack.c.l.b16 %v113
    %v345 = vunpack.c.l.b16 %v114
    %v346 = vunpack.c.l.b16 %v115
    %v347 = vunpack.c.l.b16 %v116
    %v348 = vunpack.c.l.b16 %v117
    %v349 = vunpack.c.l.b16 %v118
    %v350 = vunpack.c.l.b16 %v119
    %v351 = vunpack.c.l.b16 %v120
    %v352 = vunpack.c.l.b16 %v121
    %v353 = vunpack.c.l.b16 %v122
    %v354 = vunpack.c.l.b16 %v123
    %v355 = vunpack.c.l.b16 %v124
    %v356 = vunpack.c.l.b16 %v125
    %v357 = vunpack.c.l.b16 %v126
    %v358 = vpack.c.b16 %v327, %v326
    %v359 = vpack.c.b16 %v329, %v328
    %v360 = vpack.c.b16 %v331, %v330
    %v361 = vpack.c.b16 %v333, %v332
    %v362 = vpack.c.b16 %v335, %v334
    %v363 = vpack.c.b16 %v337, %v336
    %v364 = vpack.c.b16 %v339, %v338
    %v365 = vpack.c.b16 %v341, %v340
    %v366 = vpack.c.b16 %v343, %v342
    %v367 = vpack.c.b16 %v345, %v344
    %v368 = vpack.c.b16 %v347, %v346
    %v369 = vpack.c.b16 %v349, %v348
    %v370 = vpack.c.b16 %v351, %v350
    %v371 = vpack.c.b16 %v353, %v352
    %v372 = vpack.c.b16 %v355, %v354
    %v373 = vpack.c.b16 %v357, %v356
    %390 = vmatprep.subr.bf16.mxu0 0
    %391 = vmatpush1.bf16.msra.mxu0 %v358
    %392 = vmatprep.subr.bf16.mxu0 0
    %393 = vmatpush1.bf16.msra.mxu0 %v359
    %394 = vmatprep.subr.bf16.mxu0 0
    %395 = vmatpush1.bf16.msra.mxu0 %v360
    %396 = vmatprep.subr.bf16.mxu0 0
    %397 = vmatpush1.bf16.msra.mxu0 %v361
    %398 = vmatprep.subr.bf16.mxu0 0
    %399 = vmatpush1.bf16.msra.mxu0 %v362
    %400 = vmatprep.subr.bf16.mxu0 0
    %401 = vmatpush1.bf16.msra.mxu0 %v363
    %402 = vmatprep.subr.bf16.mxu0 0
    %403 = vmatpush1.bf16.msra.mxu0 %v364
    %404 = vmatprep.subr.bf16.mxu0 0
    %405 = vmatpush1.bf16.msra.mxu0 %v365
    %406 = vmatprep.subr.bf16.mxu0 0
    %407 = vmatpush1.bf16.msra.mxu0 %v366
    %408 = vmatprep.subr.bf16.mxu0 0
    %409 = vmatpush1.bf16.msra.mxu0 %v367
    %410 = vmatprep.subr.bf16.mxu0 0
    %411 = vmatpush1.bf16.msra.mxu0 %v368
    %412 = vmatprep.subr.bf16.mxu0 0
    %413 = vmatpush1.bf16.msra.mxu0 %v369
    %414 = vmatprep.subr.bf16.mxu0 0
    %415 = vmatpush1.bf16.msra.mxu0 %v370
    %416 = vmatprep.subr.bf16.mxu0 0
    %417 = vmatpush1.bf16.msra.mxu0 %v371
    %418 = vmatprep.subr.bf16.mxu0 0
    %419 = vmatpush1.bf16.msra.mxu0 %v372
    %420 = vmatprep.subr.bf16.mxu0 0
    %421 = vmatpush1.bf16.msra.mxu0 %v373
    %422 = vmatprep.mubr.bf16.mxu0 %v231
    %423 = vmatmul.mubr.bf16.gmra.mrb[0].mxu0 %v230
    %v424 = vpop.f32.mrb[0].mxu0
    %v425 = vadd.f32 %v132, %v424
    %v426 = vpop.f32.mrb[0].mxu0
    %v427 = vpop.f32.mrb[0].mxu0
    %v428 = vadd.f32 %v132, %v427
    %v429 = vpop.f32.mrb[0].mxu0
    %430 = vmatprep.mubr.bf16.mxu0 %v233
    %431 = vmatmul.mubr.bf16.gmra.mrb[0].mxu0 %v232
    %v432 = vpop.f32.mrb[0].mxu0
    %v433 = vadd.f32 %v132, %v432
    %v434 = vpop.f32.mrb[0].mxu0
    %v435 = vpop.f32.mrb[0].mxu0
    %v436 = vadd.f32 %v132, %v435
    %v437 = vpop.f32.mrb[0].mxu0
    %438 = vmatprep.mubr.bf16.mxu0 %v235
    %439 = vmatmul.mubr.bf16.gmra.mrb[0].mxu0 %v234
    %v440 = vpop.f32.mrb[0].mxu0
    %v441 = vadd.f32 %v132, %v440
    %v442 = vpop.f32.mrb[0].mxu0
    %v443 = vpop.f32.mrb[0].mxu0
    %v444 = vadd.f32 %v132, %v443
    %v445 = vpop.f32.mrb[0].mxu0
    %446 = vmatprep.mubr.bf16.mxu0 %v237
    %447 = vmatmul.mubr.bf16.gmra.mrb[0].mxu0 %v236
    %v448 = vpop.f32.mrb[0].mxu0
    %v449 = vadd.f32 %v132, %v448
    %v450 = vpop.f32.mrb[0].mxu0
    %v451 = vpop.f32.mrb[0].mxu0
    %v452 = vadd.f32 %v132, %v451
    %v453 = vpop.f32.mrb[0].mxu0
    %454 = vmatprep.mubr.bf16.mxu0 %v239
    %455 = vmatmul.mubr.bf16.gmra.mrb[0].mxu0 %v238
    %v456 = vpop.f32.mrb[0].mxu0
    %v457 = vadd.f32 %v132, %v456
    %v458 = vpop.f32.mrb[0].mxu0
    %v459 = vpop.f32.mrb[0].mxu0
    %v460 = vadd.f32 %v132, %v459
    %v461 = vpop.f32.mrb[0].mxu0
    %462 = vmatprep.mubr.bf16.mxu0 %v241
    %463 = vmatmul.mubr.bf16.gmra.mrb[0].mxu0 %v240
    %v464 = vpop.f32.mrb[0].mxu0
    %v465 = vadd.f32 %v132, %v464
    %v466 = vpop.f32.mrb[0].mxu0
    %v467 = vpop.f32.mrb[0].mxu0
    %v468 = vadd.f32 %v132, %v467
    %v469 = vpop.f32.mrb[0].mxu0
    %470 = vmatprep.mubr.bf16.mxu0 %v243
    %471 = vmatmul.mubr.bf16.gmra.mrb[0].mxu0 %v242
    %v472 = vpop.f32.mrb[0].mxu0
    %v473 = vadd.f32 %v132, %v472
    %v474 = vpop.f32.mrb[0].mxu0
    %v475 = vpop.f32.mrb[0].mxu0
    %v476 = vadd.f32 %v132, %v475
    %v477 = vpop.f32.mrb[0].mxu0
    %478 = vmatprep.mubr.bf16.mxu0 %v245
    %479 = vmatmul.mubr.bf16.gmra.mrb[0].mxu0 %v244
    %v480 = vpop.f32.mrb[0].mxu0
    %v481 = vadd.f32 %v132, %v480
    %v482 = vpop.f32.mrb[0].mxu0
    %v483 = vpop.f32.mrb[0].mxu0
    %v484 = vadd.f32 %v132, %v483
    %v485 = vpop.f32.mrb[0].mxu0
    %486 = vmatprep.mubr.bf16.mxu0 %v247
    %487 = vmatmul.mubr.bf16.gmra.mrb[0].mxu0 %v246
    %v488 = vpop.f32.mrb[0].mxu0
    %v489 = vadd.f32 %v132, %v488
    %v490 = vpop.f32.mrb[0].mxu0
    %v491 = vpop.f32.mrb[0].mxu0
    %v492 = vadd.f32 %v132, %v491
    %v493 = vpop.f32.mrb[0].mxu0
    %494 = vmatprep.mubr.bf16.mxu0 %v249
    %495 = vmatmul.mubr.bf16.gmra.mrb[0].mxu0 %v248
    %v496 = vpop.f32.mrb[0].mxu0
    %v497 = vadd.f32 %v132, %v496
    %v498 = vpop.f32.mrb[0].mxu0
    %v499 = vpop.f32.mrb[0].mxu0
    %v500 = vadd.f32 %v132, %v499
    %v501 = vpop.f32.mrb[0].mxu0
    %502 = vmatprep.mubr.bf16.mxu0 %v251
    %503 = vmatmul.mubr.bf16.gmra.mrb[0].mxu0 %v250
    %v504 = vpop.f32.mrb[0].mxu0
    %v505 = vadd.f32 %v132, %v504
    %v506 = vpop.f32.mrb[0].mxu0
    %v507 = vpop.f32.mrb[0].mxu0
    %v508 = vadd.f32 %v132, %v507
    %v509 = vpop.f32.mrb[0].mxu0
    %510 = vmatprep.mubr.bf16.mxu0 %v253
    %511 = vmatmul.mubr.bf16.gmra.mrb[0].mxu0 %v252
    %v512 = vpop.f32.mrb[0].mxu0
    %v513 = vadd.f32 %v132, %v512
    %v514 = vpop.f32.mrb[0].mxu0
    %v515 = vpop.f32.mrb[0].mxu0
    %v516 = vadd.f32 %v132, %v515
    %v517 = vpop.f32.mrb[0].mxu0
    %518 = vmatprep.mubr.bf16.mxu0 %v255
    %519 = vmatmul.mubr.bf16.gmra.mrb[0].mxu0 %v254
    %v520 = vpop.f32.mrb[0].mxu0
    %v521 = vadd.f32 %v132, %v520
    %v522 = vpop.f32.mrb[0].mxu0
    %v523 = vpop.f32.mrb[0].mxu0
    %v524 = vadd.f32 %v132, %v523
    %v525 = vpop.f32.mrb[0].mxu0
    %526 = vmatprep.mubr.bf16.mxu0 %v257
    %527 = vmatmul.mubr.bf16.gmra.mrb[0].mxu0 %v256
    %v528 = vpop.f32.mrb[0].mxu0
    %v529 = vadd.f32 %v132, %v528
    %v530 = vpop.f32.mrb[0].mxu0
    %v531 = vpop.f32.mrb[0].mxu0
    %v532 = vadd.f32 %v132, %v531
    %v533 = vpop.f32.mrb[0].mxu0
    %534 = vmatprep.mubr.bf16.mxu0 %v259
    %535 = vmatmul.mubr.bf16.gmra.mrb[0].mxu0 %v258
    %v536 = vpop.f32.mrb[0].mxu0
    %v537 = vadd.f32 %v132, %v536
    %v538 = vpop.f32.mrb[0].mxu0
    %v539 = vpop.f32.mrb[0].mxu0
    %v540 = vadd.f32 %v132, %v539
    %v541 = vpop.f32.mrb[0].mxu0
    %542 = vmatprep.mubr.bf16.mxu0 %v261
    %543 = vmatmul.mubr.bf16.gmra.mrb[0].mxu0 %v260
    %v544 = vpop.f32.mrb[0].mxu0
    %v545 = vadd.f32 %v132, %v544
    %v546 = vpop.f32.mrb[0].mxu0
    %v547 = vpop.f32.mrb[0].mxu0
    %v548 = vadd.f32 %v132, %v547
    %v549 = vpop.f32.mrb[0].mxu0
    %550 = vdwg.mxu0
    %v551 = vmax.f32 %v425, 0.0
    %v552 = vmax.f32 %v428, 0.0
    %v553 = vmax.f32 %v433, 0.0
    %v554 = vmax.f32 %v436, 0.0
    %v555 = vmax.f32 %v441, 0.0
    %v556 = vmax.f32 %v444, 0.0
    %v557 = vmax.f32 %v449, 0.0
    %v558 = vmax.f32 %v452, 0.0
    %v559 = vmax.f32 %v457, 0.0
    %v560 = vmax.f32 %v460, 0.0
    %v561 = vmax.f32 %v465, 0.0
    %v562 = vmax.f32 %v468, 0.0
    %v563 = vmax.f32 %v473, 0.0
    %v564 = vmax.f32 %v476, 0.0
    %v565 = vmax.f32 %v481, 0.0
    %v566 = vmax.f32 %v484, 0.0
    %v567 = vmax.f32 %v489, 0.0
    %v568 = vmax.f32 %v492, 0.0
    %v569 = vmax.f32 %v497, 0.0
    %v570 = vmax.f32 %v500, 0.0
    %v571 = vmax.f32 %v505, 0.0
    %v572 = vmax.f32 %v508, 0.0
    %v573 = vmax.f32 %v513, 0.0
    %v574 = vmax.f32 %v516, 0.0
    %v575 = vmax.f32 %v521, 0.0
    %v576 = vmax.f32 %v524, 0.0
    %v577 = vmax.f32 %v529, 0.0
    %v578 = vmax.f32 %v532, 0.0
    %v579 = vmax.f32 %v537, 0.0
    %v580 = vmax.f32 %v540, 0.0
    %v581 = vmax.f32 %v545, 0.0
    %v582 = vmax.f32 %v548, 0.0
    %v583 = vpack.c.bf16 %v552, %v551
    %v584 = vpack.c.bf16 %v554, %v553
    %v585 = vpack.c.bf16 %v556, %v555
    %v586 = vpack.c.bf16 %v558, %v557
    %v587 = vpack.c.bf16 %v560, %v559
    %v588 = vpack.c.bf16 %v562, %v561
    %v589 = vpack.c.bf16 %v564, %v563
    %v590 = vpack.c.bf16 %v566, %v565
    %v591 = vpack.c.bf16 %v568, %v567
    %v592 = vpack.c.bf16 %v570, %v569
    %v593 = vpack.c.bf16 %v572, %v571
    %v594 = vpack.c.bf16 %v574, %v573
    %v595 = vpack.c.bf16 %v576, %v575
    %v596 = vpack.c.bf16 %v578, %v577
    %v597 = vpack.c.bf16 %v580, %v579
    %v598 = vpack.c.bf16 %v582, %v581
    %599 = vmatprep.subr.bf16.mxu0 0
    %600 = vmatpush1.bf16.msra.mxu0 %v583
    %601 = vmatprep.subr.bf16.mxu0 0
    %602 = vmatpush1.bf16.msra.mxu0 %v584
    %603 = vmatprep.subr.bf16.mxu0 0
    %604 = vmatpush1.bf16.msra.mxu0 %v585
    %605 = vmatprep.subr.bf16.mxu0 0
    %606 = vmatpush1.bf16.msra.mxu0 %v586
    %607 = vmatprep.subr.bf16.mxu0 0
    %608 = vmatpush1.bf16.msra.mxu0 %v587
    %609 = vmatprep.subr.bf16.mxu0 0
    %610 = vmatpush1.bf16.msra.mxu0 %v588
    %611 = vmatprep.subr.bf16.mxu0 0
    %612 = vmatpush1.bf16.msra.mxu0 %v589
    %613 = vmatprep.subr.bf16.mxu0 0
    %614 = vmatpush1.bf16.msra.mxu0 %v590
    %615 = vmatprep.subr.bf16.mxu0 0
    %616 = vmatpush1.bf16.msra.mxu0 %v591
    %617 = vmatprep.subr.bf16.mxu0 0
    %618 = vmatpush1.bf16.msra.mxu0 %v592
    %619 = vmatprep.subr.bf16.mxu0 0
    %620 = vmatpush1.bf16.msra.mxu0 %v593
    %621 = vmatprep.subr.bf16.mxu0 0
    %622 = vmatpush1.bf16.msra.mxu0 %v594
    %623 = vmatprep.subr.bf16.mxu0 0
    %624 = vmatpush1.bf16.msra.mxu0 %v595
    %625 = vmatprep.subr.bf16.mxu0 0
    %626 = vmatpush1.bf16.msra.mxu0 %v596
    %627 = vmatprep.subr.bf16.mxu0 0
    %628 = vmatpush1.bf16.msra.mxu0 %v597
    %629 = vmatprep.subr.bf16.mxu0 0
    %630 = vmatpush1.bf16.msra.mxu0 %v598
    %631 = vmatprep.mubr.bf16.mxu0 %v231
    %632 = vmatmul.mubr.bf16.gmra.mrb[0].mxu0 %v230
    %v633 = vpop.f32.mrb[0].mxu0
    %v634 = vadd.f32 0.0, %v633
    %v635 = vpop.f32.mrb[0].mxu0
    %v636 = vpop.f32.mrb[0].mxu0
    %v637 = vadd.f32 0.0, %v636
    %v638 = vpop.f32.mrb[0].mxu0
    %639 = vmatprep.mubr.bf16.mxu0 %v233
    %640 = vmatmul.mubr.bf16.gmra.mrb[0].mxu0 %v232
    %v641 = vpop.f32.mrb[0].mxu0
    %v642 = vadd.f32 0.0, %v641
    %v643 = vpop.f32.mrb[0].mxu0
    %v644 = vpop.f32.mrb[0].mxu0
    %v645 = vadd.f32 0.0, %v644
    %v646 = vpop.f32.mrb[0].mxu0
    %647 = vmatprep.mubr.bf16.mxu0 %v235
    %648 = vmatmul.mubr.bf16.gmra.mrb[0].mxu0 %v234
    %v649 = vpop.f32.mrb[0].mxu0
    %v650 = vadd.f32 0.0, %v649
    %v651 = vpop.f32.mrb[0].mxu0
    %v652 = vpop.f32.mrb[0].mxu0
    %v653 = vadd.f32 0.0, %v652
    %v654 = vpop.f32.mrb[0].mxu0
    %655 = vmatprep.mubr.bf16.mxu0 %v237
    %656 = vmatmul.mubr.bf16.gmra.mrb[0].mxu0 %v236
    %v657 = vpop.f32.mrb[0].mxu0
    %v658 = vadd.f32 0.0, %v657
    %v659 = vpop.f32.mrb[0].mxu0
    %v660 = vpop.f32.mrb[0].mxu0
    %v661 = vadd.f32 0.0, %v660
    %v662 = vpop.f32.mrb[0].mxu0
    %663 = vmatprep.mubr.bf16.mxu0 %v239
    %664 = vmatmul.mubr.bf16.gmra.mrb[0].mxu0 %v238
    %v665 = vpop.f32.mrb[0].mxu0
    %v666 = vadd.f32 0.0, %v665
    %v667 = vpop.f32.mrb[0].mxu0
    %v668 = vpop.f32.mrb[0].mxu0
    %v669 = vadd.f32 0.0, %v668
    %v670 = vpop.f32.mrb[0].mxu0
    %671 = vmatprep.mubr.bf16.mxu0 %v241
    %672 = vmatmul.mubr.bf16.gmra.mrb[0].mxu0 %v240
    %v673 = vpop.f32.mrb[0].mxu0
    %v674 = vadd.f32 0.0, %v673
    %v675 = vpop.f32.mrb[0].mxu0
    %v676 = vpop.f32.mrb[0].mxu0
    %v677 = vadd.f32 0.0, %v676
    %v678 = vpop.f32.mrb[0].mxu0
    %679 = vmatprep.mubr.bf16.mxu0 %v243
    %680 = vmatmul.mubr.bf16.gmra.mrb[0].mxu0 %v242
    %v681 = vpop.f32.mrb[0].mxu0
    %v682 = vadd.f32 0.0, %v681
    %v683 = vpop.f32.mrb[0].mxu0
    %v684 = vpop.f32.mrb[0].mxu0
    %v685 = vadd.f32 0.0, %v684
    %v686 = vpop.f32.mrb[0].mxu0
    %687 = vmatprep.mubr.bf16.mxu0 %v245
    %688 = vmatmul.mubr.bf16.gmra.mrb[0].mxu0 %v244
    %v689 = vpop.f32.mrb[0].mxu0
    %v690 = vadd.f32 0.0, %v689
    %v691 = vpop.f32.mrb[0].mxu0
    %v692 = vpop.f32.mrb[0].mxu0
    %v693 = vadd.f32 0.0, %v692
    %v694 = vpop.f32.mrb[0].mxu0
    %695 = vmatprep.mubr.bf16.mxu0 %v247
    %696 = vmatmul.mubr.bf16.gmra.mrb[0].mxu0 %v246
    %v697 = vpop.f32.mrb[0].mxu0
    %v698 = vadd.f32 0.0, %v697
    %v699 = vpop.f32.mrb[0].mxu0
    %v700 = vpop.f32.mrb[0].mxu0
    %v701 = vadd.f32 0.0, %v700
    %v702 = vpop.f32.mrb[0].mxu0
    %703 = vmatprep.mubr.bf16.mxu0 %v249
    %704 = vmatmul.mubr.bf16.gmra.mrb[0].mxu0 %v248
    %v705 = vpop.f32.mrb[0].mxu0
    %v706 = vadd.f32 0.0, %v705
    %v707 = vpop.f32.mrb[0].mxu0
    %v708 = vpop.f32.mrb[0].mxu0
    %v709 = vadd.f32 0.0, %v708
    %v710 = vpop.f32.mrb[0].mxu0
    %711 = vmatprep.mubr.bf16.mxu0 %v251
    %712 = vmatmul.mubr.bf16.gmra.mrb[0].mxu0 %v250
    %v713 = vpop.f32.mrb[0].mxu0
    %v714 = vadd.f32 0.0, %v713
    %v715 = vpop.f32.mrb[0].mxu0
    %v716 = vpop.f32.mrb[0].mxu0
    %v717 = vadd.f32 0.0, %v716
    %v718 = vpop.f32.mrb[0].mxu0
    %719 = vmatprep.mubr.bf16.mxu0 %v253
    %720 = vmatmul.mubr.bf16.gmra.mrb[0].mxu0 %v252
    %v721 = vpop.f32.mrb[0].mxu0
    %v722 = vadd.f32 0.0, %v721
    %v723 = vpop.f32.mrb[0].mxu0
    %v724 = vpop.f32.mrb[0].mxu0
    %v725 = vadd.f32 0.0, %v724
    %v726 = vpop.f32.mrb[0].mxu0
    %727 = vmatprep.mubr.bf16.mxu0 %v255
    %728 = vmatmul.mubr.bf16.gmra.mrb[0].mxu0 %v254
    %v729 = vpop.f32.mrb[0].mxu0
    %v730 = vadd.f32 0.0, %v729
    %v731 = vpop.f32.mrb[0].mxu0
    %v732 = vpop.f32.mrb[0].mxu0
    %v733 = vadd.f32 0.0, %v732
    %v734 = vpop.f32.mrb[0].mxu0
    %735 = vmatprep.mubr.bf16.mxu0 %v257
    %736 = vmatmul.mubr.bf16.gmra.mrb[0].mxu0 %v256
    %v737 = vpop.f32.mrb[0].mxu0
    %v738 = vadd.f32 0.0, %v737
    %v739 = vpop.f32.mrb[0].mxu0
    %v740 = vpop.f32.mrb[0].mxu0
    %v741 = vadd.f32 0.0, %v740
    %v742 = vpop.f32.mrb[0].mxu0
    %743 = vmatprep.mubr.bf16.mxu0 %v259
    %744 = vmatmul.mubr.bf16.gmra.mrb[0].mxu0 %v258
    %v745 = vpop.f32.mrb[0].mxu0
    %v746 = vadd.f32 0.0, %v745
    %v747 = vpop.f32.mrb[0].mxu0
    %v748 = vpop.f32.mrb[0].mxu0
    %v749 = vadd.f32 0.0, %v748
    %v750 = vpop.f32.mrb[0].mxu0
    %751 = vmatprep.mubr.bf16.mxu0 %v261
    %752 = vmatmul.mubr.bf16.gmra.mrb[0].mxu0 %v260
    %v753 = vpop.f32.mrb[0].mxu0
    %v754 = vadd.f32 0.0, %v753
    %v755 = vpop.f32.mrb[0].mxu0
    %v756 = vpop.f32.mrb[0].mxu0
    %v757 = vadd.f32 0.0, %v756
    %v758 = vpop.f32.mrb[0].mxu0
    %759 = vdwg.mxu0
    %v760 = vpack.c.bf16 %v637, %v634
    %v761 = vpack.c.bf16 %v645, %v642
    %v762 = vpack.c.bf16 %v653, %v650
    %v763 = vpack.c.bf16 %v661, %v658
    %v764 = vpack.c.bf16 %v669, %v666
    %v765 = vpack.c.bf16 %v677, %v674
    %v766 = vpack.c.bf16 %v685, %v682
    %v767 = vpack.c.bf16 %v693, %v690
    %v768 = vpack.c.bf16 %v701, %v698
    %v769 = vpack.c.bf16 %v709, %v706
    %v770 = vpack.c.bf16 %v717, %v714
    %v771 = vpack.c.bf16 %v725, %v722
    %v772 = vpack.c.bf16 %v733, %v730
    %v773 = vpack.c.bf16 %v741, %v738
    %v774 = vpack.c.bf16 %v749, %v746
    %v775 = vpack.c.bf16 %v757, %v754
    %v776 = vld [vmem:[#allocation7] sm:$0xf]
    %v777 = vld [vmem:[#allocation7 + $0x4] sm:$0xf]
    %v778 = vld [vmem:[#allocation7 + $0x8] sm:$0xf]
    %v779 = vld [vmem:[#allocation7 + $0xc] sm:$0xf]
    %v780 = vld [vmem:[#allocation7 + $0x10] sm:$0xf]
    %v781 = vld [vmem:[#allocation7 + $0x14] sm:$0xf]
    %v782 = vld [vmem:[#allocation7 + $0x18] sm:$0xf]
    %v783 = vld [vmem:[#allocation7 + $0x1c] sm:$0xf]
    %v784 = vld [vmem:[#allocation7 + $0x20] sm:$0xf]
    %v785 = vld [vmem:[#allocation7 + $0x24] sm:$0xf]
    %v786 = vld [vmem:[#allocation7 + $0x28] sm:$0xf]
    %v787 = vld [vmem:[#allocation7 + $0x2c] sm:$0xf]
    %v788 = vld [vmem:[#allocation7 + $0x30] sm:$0xf]
    %v789 = vld [vmem:[#allocation7 + $0x34] sm:$0xf]
    %v790 = vld [vmem:[#allocation7 + $0x38] sm:$0xf]
    %v791 = vld [vmem:[#allocation7 + $0x3c] sm:$0xf]
    %v792 = vld [vmem:[%s4] sm:$0x1]
    %v794 = vlaneseq
    %v795 = vshrl.u32 %v794, 7
    %v796 = vsub.s32 0, %v795
    %v797 = vrot.slane %v792, %v796
    %v815 = vunpack.c.l.b16 %v776
    %v816 = vunpack.c.l.b16 %v777
    %v817 = vunpack.c.l.b16 %v778
    %v818 = vunpack.c.l.b16 %v779
    %v819 = vunpack.c.l.b16 %v780
    %v820 = vunpack.c.l.b16 %v781
    %v821 = vunpack.c.l.b16 %v782
    %v822 = vunpack.c.l.b16 %v783
    %v823 = vunpack.c.l.b16 %v784
    %v824 = vunpack.c.l.b16 %v785
    %v825 = vunpack.c.l.b16 %v786
    %v826 = vunpack.c.l.b16 %v787
    %v827 = vunpack.c.l.b16 %v788
    %v828 = vunpack.c.l.b16 %v789
    %v829 = vunpack.c.l.b16 %v790
    %v830 = vunpack.c.l.b16 %v791
    %v831 = vpack.c.b16 %v816, %v815
    %v832 = vpack.c.b16 %v818, %v817
    %v833 = vpack.c.b16 %v820, %v819
    %v834 = vpack.c.b16 %v822, %v821
    %v835 = vpack.c.b16 %v824, %v823
    %v836 = vpack.c.b16 %v826, %v825
    %v837 = vpack.c.b16 %v828, %v827
    %v838 = vpack.c.b16 %v830, %v829
    %847 = vmatprep.subr.bf16.mxu0 0
    %848 = vmatpush1.bf16.msra.mxu0 %v831
    %849 = vmatprep.subr.bf16.mxu0 0
    %850 = vmatpush1.bf16.msra.mxu0 %v832
    %851 = vmatprep.subr.bf16.mxu0 0
    %852 = vmatpush1.bf16.msra.mxu0 %v833
    %853 = vmatprep.subr.bf16.mxu0 0
    %854 = vmatpush1.bf16.msra.mxu0 %v834
    %855 = vmatprep.subr.bf16.mxu0 0
    %856 = vmatpush1.bf16.msra.mxu0 %v835
    %857 = vmatprep.subr.bf16.mxu0 0
    %858 = vmatpush1.bf16.msra.mxu0 %v836
    %859 = vmatprep.subr.bf16.mxu0 0
    %860 = vmatpush1.bf16.msra.mxu0 %v837
    %861 = vmatprep.subr.bf16.mxu0 0
    %862 = vmatpush1.bf16.msra.mxu0 %v838
    %863 = vmatprep.subr.bf16.mxu0 0
    %864 = vmatpush1.bf16.msra.mxu0 0
    %865 = vmatprep.subr.bf16.mxu0 0
    %866 = vmatpush1.bf16.msra.mxu0 0
    %867 = vmatprep.subr.bf16.mxu0 0
    %868 = vmatpush1.bf16.msra.mxu0 0
    %869 = vmatprep.subr.bf16.mxu0 0
    %870 = vmatpush1.bf16.msra.mxu0 0
    %871 = vmatprep.subr.bf16.mxu0 0
    %872 = vmatpush1.bf16.msra.mxu0 0
    %873 = vmatprep.subr.bf16.mxu0 0
    %874 = vmatpush1.bf16.msra.mxu0 0
    %875 = vmatprep.subr.bf16.mxu0 0
    %876 = vmatpush1.bf16.msra.mxu0 0
    %877 = vmatprep.subr.bf16.mxu0 0
    %878 = vmatpush1.bf16.msra.mxu0 0
    %879 = vmatprep.mubr.bf16.mxu0 0
    %880 = vmatmul.mubr.bf16.gmra.mrb[0].mxu0 %v760
    %v881 = vpop.f32.mrb[0].mxu0
    %v882 = vadd.f32 %v797, %v881
    %v883 = vpop.f32.mrb[0].mxu0
    %v884 = vpop.f32.mrb[0].mxu0
    %v885 = vadd.f32 %v797, %v884
    %v886 = vpop.f32.mrb[0].mxu0
    %887 = vmatprep.mubr.bf16.mxu0 0
    %888 = vmatmul.mubr.bf16.gmra.mrb[0].mxu0 %v761
    %v889 = vpop.f32.mrb[0].mxu0
    %v890 = vadd.f32 %v797, %v889
    %v891 = vpop.f32.mrb[0].mxu0
    %v892 = vpop.f32.mrb[0].mxu0
    %v893 = vadd.f32 %v797, %v892
    %v894 = vpop.f32.mrb[0].mxu0
    %895 = vmatprep.mubr.bf16.mxu0 0
    %896 = vmatmul.mubr.bf16.gmra.mrb[0].mxu0 %v762
    %v897 = vpop.f32.mrb[0].mxu0
    %v898 = vadd.f32 %v797, %v897
    %v899 = vpop.f32.mrb[0].mxu0
    %v900 = vpop.f32.mrb[0].mxu0
    %v901 = vadd.f32 %v797, %v900
    %v902 = vpop.f32.mrb[0].mxu0
    %903 = vmatprep.mubr.bf16.mxu0 0
    %904 = vmatmul.mubr.bf16.gmra.mrb[0].mxu0 %v763
    %v905 = vpop.f32.mrb[0].mxu0
    %v906 = vadd.f32 %v797, %v905
    %v907 = vpop.f32.mrb[0].mxu0
    %v908 = vpop.f32.mrb[0].mxu0
    %v909 = vadd.f32 %v797, %v908
    %v910 = vpop.f32.mrb[0].mxu0
    %911 = vmatprep.mubr.bf16.mxu0 0
    %912 = vmatmul.mubr.bf16.gmra.mrb[0].mxu0 %v764
    %v913 = vpop.f32.mrb[0].mxu0
    %v914 = vadd.f32 %v797, %v913
    %v915 = vpop.f32.mrb[0].mxu0
    %v916 = vpop.f32.mrb[0].mxu0
    %v917 = vadd.f32 %v797, %v916
    %v918 = vpop.f32.mrb[0].mxu0
    %919 = vmatprep.mubr.bf16.mxu0 0
    %920 = vmatmul.mubr.bf16.gmra.mrb[0].mxu0 %v765
    %v921 = vpop.f32.mrb[0].mxu0
    %v922 = vadd.f32 %v797, %v921
    %v923 = vpop.f32.mrb[0].mxu0
    %v924 = vpop.f32.mrb[0].mxu0
    %v925 = vadd.f32 %v797, %v924
    %v926 = vpop.f32.mrb[0].mxu0
    %927 = vmatprep.mubr.bf16.mxu0 0
    %928 = vmatmul.mubr.bf16.gmra.mrb[0].mxu0 %v766
    %v929 = vpop.f32.mrb[0].mxu0
    %v930 = vadd.f32 %v797, %v929
    %v931 = vpop.f32.mrb[0].mxu0
    %v932 = vpop.f32.mrb[0].mxu0
    %v933 = vadd.f32 %v797, %v932
    %v934 = vpop.f32.mrb[0].mxu0
    %935 = vmatprep.mubr.bf16.mxu0 0
    %936 = vmatmul.mubr.bf16.gmra.mrb[0].mxu0 %v767
    %v937 = vpop.f32.mrb[0].mxu0
    %v938 = vadd.f32 %v797, %v937
    %v939 = vpop.f32.mrb[0].mxu0
    %v940 = vpop.f32.mrb[0].mxu0
    %v941 = vadd.f32 %v797, %v940
    %v942 = vpop.f32.mrb[0].mxu0
    %943 = vmatprep.mubr.bf16.mxu0 0
    %944 = vmatmul.mubr.bf16.gmra.mrb[0].mxu0 %v768
    %v945 = vpop.f32.mrb[0].mxu0
    %v946 = vadd.f32 %v797, %v945
    %v947 = vpop.f32.mrb[0].mxu0
    %v948 = vpop.f32.mrb[0].mxu0
    %v949 = vadd.f32 %v797, %v948
    %v950 = vpop.f32.mrb[0].mxu0
    %951 = vmatprep.mubr.bf16.mxu0 0
    %952 = vmatmul.mubr.bf16.gmra.mrb[0].mxu0 %v769
    %v953 = vpop.f32.mrb[0].mxu0
    %v954 = vadd.f32 %v797, %v953
    %v955 = vpop.f32.mrb[0].mxu0
    %v956 = vpop.f32.mrb[0].mxu0
    %v957 = vadd.f32 %v797, %v956
    %v958 = vpop.f32.mrb[0].mxu0
    %959 = vmatprep.mubr.bf16.mxu0 0
    %960 = vmatmul.mubr.bf16.gmra.mrb[0].mxu0 %v770
    %v961 = vpop.f32.mrb[0].mxu0
    %v962 = vadd.f32 %v797, %v961
    %v963 = vpop.f32.mrb[0].mxu0
    %v964 = vpop.f32.mrb[0].mxu0
    %v965 = vadd.f32 %v797, %v964
    %v966 = vpop.f32.mrb[0].mxu0
    %967 = vmatprep.mubr.bf16.mxu0 0
    %968 = vmatmul.mubr.bf16.gmra.mrb[0].mxu0 %v771
    %v969 = vpop.f32.mrb[0].mxu0
    %v970 = vadd.f32 %v797, %v969
    %v971 = vpop.f32.mrb[0].mxu0
    %v972 = vpop.f32.mrb[0].mxu0
    %v973 = vadd.f32 %v797, %v972
    %v974 = vpop.f32.mrb[0].mxu0
    %975 = vmatprep.mubr.bf16.mxu0 0
    %976 = vmatmul.mubr.bf16.gmra.mrb[0].mxu0 %v772
    %v977 = vpop.f32.mrb[0].mxu0
    %v978 = vadd.f32 %v797, %v977
    %v979 = vpop.f32.mrb[0].mxu0
    %v980 = vpop.f32.mrb[0].mxu0
    %v981 = vadd.f32 %v797, %v980
    %v982 = vpop.f32.mrb[0].mxu0
    %983 = vmatprep.mubr.bf16.mxu0 0
    %984 = vmatmul.mubr.bf16.gmra.mrb[0].mxu0 %v773
    %v985 = vpop.f32.mrb[0].mxu0
    %v986 = vadd.f32 %v797, %v985
    %v987 = vpop.f32.mrb[0].mxu0
    %v988 = vpop.f32.mrb[0].mxu0
    %v989 = vadd.f32 %v797, %v988
    %v990 = vpop.f32.mrb[0].mxu0
    %991 = vmatprep.mubr.bf16.mxu0 0
    %992 = vmatmul.mubr.bf16.gmra.mrb[0].mxu0 %v774
    %v993 = vpop.f32.mrb[0].mxu0
    %v994 = vadd.f32 %v797, %v993
    %v995 = vpop.f32.mrb[0].mxu0
    %v996 = vpop.f32.mrb[0].mxu0
    %v997 = vadd.f32 %v797, %v996
    %v998 = vpop.f32.mrb[0].mxu0
    %999 = vmatprep.mubr.bf16.mxu0 0
    %1000 = vmatmul.mubr.bf16.gmra.mrb[0].mxu0 %v775
    %v1001 = vpop.f32.mrb[0].mxu0
    %v1002 = vadd.f32 %v797, %v1001
    %v1003 = vpop.f32.mrb[0].mxu0
    %v1004 = vpop.f32.mrb[0].mxu0
    %v1005 = vadd.f32 %v797, %v1004
    %v1006 = vpop.f32.mrb[0].mxu0
    %1007 = vdwg.mxu0
    %1008 = vst [vmem:[#allocation8] sm:$0xff] %v882
    %1009 = vst [vmem:[#allocation8 + $0x8] sm:$0xff] %v885
    %1010 = vst [vmem:[#allocation8 + $0x10] sm:$0xff] %v890
    %1011 = vst [vmem:[#allocation8 + $0x18] sm:$0xff] %v893
    %1012 = vst [vmem:[#allocation8 + $0x20] sm:$0xff] %v898
    %1013 = vst [vmem:[#allocation8 + $0x28] sm:$0xff] %v901
    %1014 = vst [vmem:[#allocation8 + $0x30] sm:$0xff] %v906
    %1015 = vst [vmem:[#allocation8 + $0x38] sm:$0xff] %v909
    %1016 = vst [vmem:[#allocation8 + $0x40] sm:$0xff] %v914
    %1017 = vst [vmem:[#allocation8 + $0x48] sm:$0xff] %v917
    %1018 = vst [vmem:[#allocation8 + $0x50] sm:$0xff] %v922
    %1019 = vst [vmem:[#allocation8 + $0x58] sm:$0xff] %v925
    %1020 = vst [vmem:[#allocation8 + $0x60] sm:$0xff] %v930
    %1021 = vst [vmem:[#allocation8 + $0x68] sm:$0xff] %v933
    %1022 = vst [vmem:[#allocation8 + $0x70] sm:$0xff] %v938
    %1023 = vst [vmem:[#allocation8 + $0x78] sm:$0xff] %v941
    %1024 = vst [vmem:[#allocation8 + $0x80] sm:$0xff] %v946
    %1025 = vst [vmem:[#allocation8 + $0x88] sm:$0xff] %v949
    %1026 = vst [vmem:[#allocation8 + $0x90] sm:$0xff] %v954
    %1027 = vst [vmem:[#allocation8 + $0x98] sm:$0xff] %v957
    %1028 = vst [vmem:[#allocation8 + $0xa0] sm:$0xff] %v962
    %1029 = vst [vmem:[#allocation8 + $0xa8] sm:$0xff] %v965
    %1030 = vst [vmem:[#allocation8 + $0xb0] sm:$0xff] %v970
    %1031 = vst [vmem:[#allocation8 + $0xb8] sm:$0xff] %v973
    %1032 = vst [vmem:[#allocation8 + $0xc0] sm:$0xff] %v978
    %1033 = vst [vmem:[#allocation8 + $0xc8] sm:$0xff] %v981
    %1034 = vst [vmem:[#allocation8 + $0xd0] sm:$0xff] %v986
    %1035 = vst [vmem:[#allocation8 + $0xd8] sm:$0xff] %v989
    %1036 = vst [vmem:[#allocation8 + $0xe0] sm:$0xff] %v994
    %1037 = vst [vmem:[#allocation8 + $0xe8] sm:$0xff] %v997
    %1038 = vst [vmem:[#allocation8 + $0xf0] sm:$0xff] %v1002
    %1039 = vst [vmem:[#allocation8 + $0xf8] sm:$0xff] %v1005
    // Predicated region
    $region34: #{tpu_custom_call.1} parent=1 // pred_check
      _
    $region35: #{tpu_custom_call.1} parent=1 // pred_check_branch
      %1041 = sbr.rel (0) target = $region37
    $region36: #{tpu_custom_call.1} parent=1 // pred_region
      %s1043 = ssub.s32 4096, 4096
      %1044 = vsyncadd [#allocation4], %s1043
      %s1045 = sshll.u32 [#allocation8], 4
      %s1046 = int_to_ptr.vmem [resolvable:$true] %s1045
      %1051 = dma.vmem_to_hbm [thread:$0]  %s1046, 4096, %s5, [#allocation4], 128, 128, 8
    $region37: #{tpu_custom_call.1} parent=1 // pred_fallthru
      _
    // Predicated region
    $region38: #{tpu_custom_call.1} parent=1 // pred_check
      _
    $region39: #{tpu_custom_call.1} parent=1 // pred_check_branch
      %1053 = sbr.rel (0) target = $region41
    $region40: #{tpu_custom_call.1} parent=1 // pred_region
      %1054 = dma.done [#allocation4], 4096
    $region41: #{tpu_custom_call.1} parent=1 // pred_fallthru
      _
    %1055 = vsyncpa [#allocation3], 1
    %1056 = vsyncpa [#allocation6], 1
    %1057 = vsyncpa [#allocation4], 1

</llo_original>
